<compile_context>
chip_gen: v7x
topology: tpu7x:2x2x1
jax: 0.10.0
libtpu: 0.0.40
codegen_flags: <defaults>
</compile_context>

<pallas_src>
import math
import numpy as np
import jax
import jax.numpy as jnp
from jax.experimental import pallas as pl
from jax.experimental.pallas import tpu as pltpu

EPS = 1e-5      # RevIN eps
_LANE = 128


def _round_up(x, m):
    return (x + m - 1) // m * m


def _fbm_nlinear_kernel(z_ref, w_ref, b_ref, aux_ref, o_ref):
    # z_ref  : [blk, L] f32        w_ref  : [L, T] (f32 or bf16, resident)
    # b_ref  : [1, T]   f32        aux_ref: [blk, 3] f32 = (aff_w, aff_b, 1/(aff_w+eps^2))
    # o_ref  : [blk, T] (f32 or bf16)
    z = z_ref[...]
    aux = aux_ref[...]
    aw = aux[:, 0:1]
    ab = aux[:, 1:2]
    inv_aw = aux[:, 2:3]

    # ---- RevIN 'norm': per-(batch,var) stats over the time axis ----
    mean = jnp.mean(z, axis=-1, keepdims=True)
    cen = z - mean
    var = jnp.mean(cen * cen, axis=-1, keepdims=True)       # unbiased=False
    v_eps = var + EPS
    inv_std = jax.lax.rsqrt(v_eps)                           # EUP rsqrt
    stdev = v_eps * inv_std                                  # == sqrt(var + eps)
    zn = (cen * inv_std) * aw + ab                           # affine

    # ---- folded rfft + Fourier basis + NLinear head: one MXU matmul ----
    mm = jnp.dot(zn.astype(w_ref.dtype), w_ref[...],
                 preferred_element_type=jnp.float32)

    # ---- fused RevIN 'denorm' epilogue ----
    # out = ((mm + bias) - ab) / (aw + eps^2) * stdev + mean
    s = inv_aw * stdev                                       # [blk, 1]
    c = mean - ab * s                                        # [blk, 1]
    o_ref[...] = ((mm + b_ref[...]) * s + c).astype(o_ref.dtype)


def fbm_nlinear_forward(z, params, *, matmul_dtype=jnp.bfloat16,
                        block_rows=1024, out_dtype=jnp.float32):
    """z: [B, C, L] float32 -> [B, C, T] (out_dtype)."""
    B, C, L = z.shape
    T = int(params["bias"].shape[-1])
    BC = B * C

    w_bytes = int(np.dtype(matmul_dtype).itemsize)
    out_bytes = int(np.dtype(out_dtype).itemsize)
    L_lane = _round_up(L, _LANE)
    T_lane = _round_up(T, _LANE)

    # ---- VMEM budget & block-size derivation ----
    try:
        cap = int(pltpu.get_tpu_info().vmem_capacity_bytes)
    except Exception:
        cap = 64 * 1024 * 1024
    vmem_cap = min(int(0.75 * cap), 64 * 1024 * 1024)        # ~48 MiB on v7x, 64 MiB on v5e/v6e

    resident = (2 * _round_up(L, 8) * T_lane * w_bytes       # W_eff buffers
                + 2 * 8 * T_lane * 4)                        # bias buffers
    per_row = 2 * (L_lane * 4 + _LANE * 4 + T_lane * out_bytes)  # z + aux + out (double-buffered)
    headroom = 4 << 20
    blk_vmem_max = max(8, ((vmem_cap - resident - headroom) // per_row) // 8 * 8)

    blk = min(int(block_rows),
              _round_up(pl.cdiv(BC, 2), 8),                  # >= 2 blocks when possible (v7x)
              blk_vmem_max)
    blk = max(8, blk // 8 * 8)
    if blk >= BC:
        blk = BC                                             # single block; block dim == array dim
    n_blocks = pl.cdiv(BC, blk)

    # ---- host-side prep (no row padding, no T padding, no L padding) ----
    z2 = z.reshape(BC, L)
    aux = jnp.stack([
        jnp.tile(params["aff_w"], B),                        # row b*C + c -> w[c]
        jnp.tile(params["aff_b"], B),
        jnp.tile(1.0 / (params["aff_w"] + EPS * EPS), B),
    ], axis=-1).astype(jnp.float32)                          # [BC, 3]
    w_eff = params["w_eff"].astype(matmul_dtype)             # [L, T]
    bias = params["bias"].reshape(1, T).astype(jnp.float32)

    vmem_limit = int(min(vmem_cap,
                         max(8 << 20, resident + blk * per_row + headroom)))

    cost = pl.CostEstimate(
        flops=2 * BC * L * T + 10 * BC * L,
        transcendentals=BC,
        bytes_accessed=(BC * L * 4 + BC * 3 * 4 + T * 4
                        + BC * T * out_bytes + L * T * w_bytes))

    out2 = pl.pallas_call(
        _fbm_nlinear_kernel,
        grid=(n_blocks,),
        in_specs=[
            pl.BlockSpec((blk, L), lambda i: (i, 0)),        # z rows (pipelined)
            pl.BlockSpec((L, T), lambda i: (0, 0)),          # W_eff (VMEM-resident)
            pl.BlockSpec((1, T), lambda i: (0, 0)),          # bias  (VMEM-resident)
            pl.BlockSpec((blk, 3), lambda i: (i, 0)),        # packed affine side-band
        ],
        out_specs=pl.BlockSpec((blk, T), lambda i: (i, 0)),
        out_shape=jax.ShapeDtypeStruct((BC, T), out_dtype),
        compiler_params=pltpu.CompilerParams(
            dimension_semantics=("parallel",),
            vmem_limit_bytes=vmem_limit),
        cost_estimate=cost,
    )(z2, w_eff, bias, aux)

    return out2.reshape(B, C, T)


def make_params(key, c_in, context_window, target_window):
    L, T = context_window, target_window
    P = L // 2 + 1
    nf = L * P                      # head_nf = context_window * (context_window//2 + 1)

    # Fourier basis, same construction as the PyTorch __init__ (fp64 trig)
    t = np.arange(0.0, 1.0, 1.0 / L)                         # L points
    i = np.arange(P, dtype=np.float64)[:, None]
    ang = 2.0 * math.pi * i * t[None, :]                     # [P, L]
    cosb = np.cos(ang)
    sinb = -np.sin(ang)
    cosb[0] *= 0.5
    sinb[0] *= 0.5

    # Linear(nf, T) -- deterministic init, PyTorch-style bounds
    kw, kb = jax.random.split(key)
    bound = 1.0 / math.sqrt(nf)
    w = jax.random.uniform(kw, (T, nf), jnp.float32, -bound, bound)   # torch [T, nf]
    b = jax.random.uniform(kb, (T,), jnp.float32, -bound, bound)

    # ---- exact fold of (rfft -> basis -> NLinear head) into one [L, T] matrix ----
    w3 = np.asarray(w, np.float64).T.reshape(P, L, T)        # w3[p,l,o] = w[o, p*L + l]
    S = w3.sum(axis=1)                                       # [P, T]
    Wc = np.einsum('pl,plt->pt', cosb, w3)                   # [P, T]
    Ws = np.einsum('pl,plt->pt', sinb, w3)                   # [P, T]
    clast = cosb[:, -1][:, None]                             # [P, 1]
    slast = sinb[:, -1][:, None]
    A = Wc - clast * S + clast                               # acts on Re(X)
    Bm = Ws - slast * S + slast                               # acts on Im(X)
    dft_cos = np.cos(ang).T                                  # [L, P] (un-halved)
    dft_sin = np.sin(ang).T
    # Re(X) = (2/L) zn @ dft_cos ;  Im(X) = -(2/L) zn @ dft_sin
    w_eff = (2.0 / L) * (dft_cos @ A - dft_sin @ Bm)         # [L, T]

    return {
        "cos": jnp.asarray(cosb, jnp.float32),
        "sin": jnp.asarray(sinb, jnp.float32),
        "w": w, "bias": b,
        "w_eff": jnp.asarray(w_eff, jnp.float32),
        "aff_w": jnp.ones((c_in,), jnp.float32),             # RevIN affine defaults
        "aff_b": jnp.zeros((c_in,), jnp.float32),
    }


def reference(z, params):
    """Pure-JAX mirror of the PyTorch forward (uses jnp.fft.rfft)."""
    B, C, L = z.shape
    mean = jnp.mean(z, axis=-1, keepdims=True)
    var = jnp.mean((z - mean) ** 2, axis=-1, keepdims=True)
    stdev = jnp.sqrt(var + EPS)
    zn = (z - mean) / stdev
    zn = zn * params["aff_w"][None, :, None] + params["aff_b"][None, :, None]

    X = jnp.fft.rfft(zn, axis=-1) / L * 2
    basis = (X.real[..., None] * params["cos"][None, None]
             + X.imag[..., None] * params["sin"][None, None])          # [B,C,P,L]
    seq_last = basis[..., -1:]                                         # [B,C,P,1]
    xf = (basis - seq_last).reshape(B, C, -1)                          # [B,C,nf]
    out = xf @ params["w"].T + params["bias"]
    out = out + jnp.sum(seq_last[..., 0], axis=-1, keepdims=True)

    out = (out - params["aff_b"][None, :, None]) / (params["aff_w"][None, :, None] + EPS * EPS)
    out = out * stdev + mean
    return out


if __name__ == "__main__":
    key = jax.random.PRNGKey(0)
    kz, kp, kz2, kp2 = jax.random.split(key, 4)

    # Case 1: spec-sized shapes (B=2, C=4, L=16, T=8) -> single row block.
    B, C, L, T = 2, 4, 16, 8
    z = jax.random.normal(kz, (B, C, L), jnp.float32)
    params = make_params(kp, C, L, T)
    ref = reference(z, params)

    # f32 matmul operands: strict check against the rfft reference.
    out_f32 = jax.block_until_ready(
        fbm_nlinear_forward(z, params, matmul_dtype=jnp.float32))
    np.testing.assert_allclose(np.asarray(out_f32), np.asarray(ref),
                               rtol=2e-3, atol=2e-4)

    # bf16 matmul operands (MXU-native fast path), f32 accumulation: looser check.
    out_bf16 = jax.block_until_ready(
        fbm_nlinear_forward(z, params, matmul_dtype=jnp.bfloat16))
    np.testing.assert_allclose(np.asarray(out_bf16), np.asarray(ref),
                               rtol=5e-2, atol=5e-2)

    # Case 2: larger row count (BC=32) -> exercises the >=2-block grid path.
    B2, C2 = 4, 8
    z2 = jax.random.normal(kz2, (B2, C2, L), jnp.float32)
    params2 = make_params(kp2, C2, L, T)
    ref2 = reference(z2, params2)
    out2 = jax.block_until_ready(
        fbm_nlinear_forward(z2, params2, matmul_dtype=jnp.float32))
    np.testing.assert_allclose(np.asarray(out2), np.asarray(ref2),
                               rtol=2e-3, atol=2e-4)

    print("KERNEL_OK")
</pallas_src>

<mosaic_0001>
module attributes {stable_mosaic.version = 11 : i64} {
  func.func @_fbm_nlinear_kernel(%arg0: i32, %arg1: memref<8x16xf32, #tpu.memory_space<vmem>>, %arg2: memref<16x8xf32, #tpu.memory_space<vmem>>, %arg3: memref<1x8xf32, #tpu.memory_space<vmem>>, %arg4: memref<8x3xf32, #tpu.memory_space<vmem>>, %arg5: memref<8x8xf32, #tpu.memory_space<vmem>>) attributes {dimension_semantics = [#tpu.dimension_semantics<parallel>], iteration_bounds = array<i64: 1>, scalar_prefetch = 0 : i64, scratch_operands = 0 : i64, tpu.core_type = #tpu.core_type<tc>, window_params = [{transform_indices = @transform_0, window_bounds = array<i64: 8, 16>}, {pipeline_mode = #tpu.pipeline_mode<synchronous>, transform_indices = @transform_1, window_bounds = array<i64: 16, 8>}, {pipeline_mode = #tpu.pipeline_mode<synchronous>, transform_indices = @transform_2, window_bounds = array<i64: 1, 8>}, {transform_indices = @transform_3, window_bounds = array<i64: 8, 3>}, {transform_indices = @transform_4, window_bounds = array<i64: 8, 8>}]} {
    %c0 = arith.constant 0 : index
    %c0_0 = arith.constant 0 : index
    %0 = vector.load %arg1[%c0, %c0_0] : memref<8x16xf32, #tpu.memory_space<vmem>>, vector<8x16xf32>
    %c0_1 = arith.constant 0 : index
    %c0_2 = arith.constant 0 : index
    %1 = vector.load %arg4[%c0_1, %c0_2] : memref<8x3xf32, #tpu.memory_space<vmem>>, vector<8x3xf32>
    %2 = vector.extract_strided_slice %1 {offsets = [0, 0], sizes = [8, 1], strides = [1, 1]} : vector<8x3xf32> to vector<8x1xf32>
    %3 = vector.extract_strided_slice %1 {offsets = [0, 1], sizes = [8, 1], strides = [1, 1]} : vector<8x3xf32> to vector<8x1xf32>
    %4 = vector.extract_strided_slice %1 {offsets = [0, 2], sizes = [8, 1], strides = [1, 1]} : vector<8x3xf32> to vector<8x1xf32>
    %cst = arith.constant dense<0.000000e+00> : vector<8xf32>
    %5 = vector.multi_reduction <add>, %0, %cst [1] : vector<8x16xf32> to vector<8xf32>
    %6 = vector.shape_cast %5 : vector<8xf32> to vector<8x1xf32>
    %cst_3 = arith.constant 1.600000e+01 : f32
    %7 = vector.broadcast %cst_3 : f32 to vector<8x1xf32>
    %8 = arith.divf %6, %7 : vector<8x1xf32>
    %9 = vector.broadcast %8 : vector<8x1xf32> to vector<8x16xf32>
    %10 = arith.subf %0, %9 : vector<8x16xf32>
    %11 = arith.mulf %10, %10 : vector<8x16xf32>
    %cst_4 = arith.constant dense<0.000000e+00> : vector<8xf32>
    %12 = vector.multi_reduction <add>, %11, %cst_4 [1] : vector<8x16xf32> to vector<8xf32>
    %13 = vector.shape_cast %12 : vector<8xf32> to vector<8x1xf32>
    %cst_5 = arith.constant 1.600000e+01 : f32
    %14 = vector.broadcast %cst_5 : f32 to vector<8x1xf32>
    %15 = arith.divf %13, %14 : vector<8x1xf32>
    %cst_6 = arith.constant 9.99999974E-6 : f32
    %16 = vector.broadcast %cst_6 : f32 to vector<8x1xf32>
    %17 = arith.addf %15, %16 : vector<8x1xf32>
    %18 = math.rsqrt %17 : vector<8x1xf32>
    %19 = arith.mulf %17, %18 : vector<8x1xf32>
    %20 = vector.broadcast %18 : vector<8x1xf32> to vector<8x16xf32>
    %21 = arith.mulf %10, %20 : vector<8x16xf32>
    %22 = vector.broadcast %2 : vector<8x1xf32> to vector<8x16xf32>
    %23 = arith.mulf %21, %22 : vector<8x16xf32>
    %24 = vector.broadcast %3 : vector<8x1xf32> to vector<8x16xf32>
    %25 = arith.addf %23, %24 : vector<8x16xf32>
    %c0_7 = arith.constant 0 : index
    %c0_8 = arith.constant 0 : index
    %26 = vector.load %arg2[%c0_7, %c0_8] : memref<16x8xf32, #tpu.memory_space<vmem>>, vector<16x8xf32>
    %cst_9 = arith.constant dense<0.000000e+00> : vector<8x8xf32>
    %27 = tpu.matmul %25, %26, %cst_9 {dimension_numbers = #tpu.dot_dimension_numbers<[1], [0], [0], [1], [0, 0, 1, 1], [], []>} : vector<8x16xf32>, vector<16x8xf32>, vector<8x8xf32> -> vector<8x8xf32>
    %28 = arith.mulf %4, %19 : vector<8x1xf32>
    %29 = arith.mulf %3, %28 : vector<8x1xf32>
    %30 = arith.subf %8, %29 : vector<8x1xf32>
    %c0_10 = arith.constant 0 : index
    %c0_11 = arith.constant 0 : index
    %31 = vector.load %arg3[%c0_10, %c0_11] : memref<1x8xf32, #tpu.memory_space<vmem>>, vector<1x8xf32>
    %32 = vector.broadcast %31 : vector<1x8xf32> to vector<8x8xf32>
    %33 = arith.addf %27, %32 : vector<8x8xf32>
    %34 = vector.broadcast %28 : vector<8x1xf32> to vector<8x8xf32>
    %35 = arith.mulf %33, %34 : vector<8x8xf32>
    %36 = vector.broadcast %30 : vector<8x1xf32> to vector<8x8xf32>
    %37 = arith.addf %35, %36 : vector<8x8xf32>
    %c0_12 = arith.constant 0 : index
    %c0_13 = arith.constant 0 : index
    %38 = vector.load %arg5[%c0_12, %c0_13] : memref<8x8xf32, #tpu.memory_space<vmem>>, vector<8x8xf32>
    tpu.vector_store %arg5[%c0_12, %c0_13], %37 {strides = array<i32>} : memref<8x8xf32, #tpu.memory_space<vmem>>, vector<8x8xf32>,
    return
  }
  func.func @transform_0(%arg0: i32) -> (i32, i32) {
    %c0_i32 = arith.constant 0 : i32
    %c0_i32_0 = arith.constant 0 : i32
    return %arg0, %c0_i32 : i32, i32
  }
  func.func @transform_1(%arg0: i32) -> (i32, i32) {
    %c0_i32 = arith.constant 0 : i32
    %c0_i32_0 = arith.constant 0 : i32
    %c0_i32_1 = arith.constant 0 : i32
    return %c0_i32, %c0_i32_0 : i32, i32
  }
  func.func @transform_2(%arg0: i32) -> (i32, i32) {
    %c0_i32 = arith.constant 0 : i32
    %c0_i32_0 = arith.constant 0 : i32
    %c0_i32_1 = arith.constant 0 : i32
    return %c0_i32, %c0_i32_0 : i32, i32
  }
  func.func @transform_3(%arg0: i32) -> (i32, i32) {
    %c0_i32 = arith.constant 0 : i32
    %c0_i32_0 = arith.constant 0 : i32
    return %arg0, %c0_i32 : i32, i32
  }
  func.func @transform_4(%arg0: i32) -> (i32, i32) {
    %c0_i32 = arith.constant 0 : i32
    %c0_i32_0 = arith.constant 0 : i32
    return %arg0, %c0_i32 : i32, i32
  }
}

</mosaic_0001>

<llo_original>
// kernel: tpu_custom_call.1
$region0: #{tpu_custom_call.1}
  #allocation0 [shape = 'u32[]', space=smem, size = 0x4, offset = 0x4, fixed_abs, tag = 'smem constant byte address 0x4 - core index']
  #allocation1 [shape = 'u32[144,128]{1,0:T(1,128)}', space=vmem, size = 0x12000, scoped, tag = 'internal scratch']
  %s0 = inlined_call_operand.vmem [shape: f32[8,16], index: 0, kind: input, shape index: {}]
  %s1 = inlined_call_operand.vmem [shape: f32[16,8], index: 1, kind: input, shape index: {}]
  %s2 = inlined_call_operand.vmem [shape: f32[1,8], index: 2, kind: input, shape index: {}]
  %s3 = inlined_call_operand.vmem [shape: f32[8,3], index: 3, kind: input, shape index: {}]
  %s4 = inlined_call_operand.hbm [shape: f32[8,8], index: 4, kind: output, shape index: {}]
  %s5 = sld [smem:[#allocation0]]
  $region26: #{tpu_custom_call.1} parent=0
    _
  %s7 = ssub.s32 1, %s5
  %s8 = scalar_select 0, %s7, %s5
  $region1: #{tpu_custom_call.1} parent=0
    #allocation2 [shape = 'u8[4096]{0}', space=vmem, size = 0x1000, scoped, tag = 'output window, operand 0, single buffered']
    #allocation3 [shape = 's32[1]{0}', space=sflag, size = 0x4, scoped, tag = 'scoped memory for tpu_custom_call.1']
    %9 = vsyncpa [#allocation3], 0
    // Predicated region
    $region2: #{tpu_custom_call.1} parent=1 // pred_check
      _
    $region3: #{tpu_custom_call.1} parent=1 // pred_check_branch
      %11 = sbr.rel (0) target = $region5
    $region4: #{tpu_custom_call.1} parent=1 // pred_region
      _
    $region5: #{tpu_custom_call.1} parent=1 // pred_fallthru
      _
    // Predicated region
    $region6: #{tpu_custom_call.1} parent=1 // pred_check
      _
    $region7: #{tpu_custom_call.1} parent=1 // pred_check_branch
      %13 = sbr.rel (0) target = $region9
    $region8: #{tpu_custom_call.1} parent=1 // pred_region
      _
    $region9: #{tpu_custom_call.1} parent=1 // pred_fallthru
      _
    // Predicated region
    $region10: #{tpu_custom_call.1} parent=1 // pred_check
      _
    $region11: #{tpu_custom_call.1} parent=1 // pred_check_branch
      %15 = sbr.rel (0) target = $region13
    $region12: #{tpu_custom_call.1} parent=1 // pred_region
      _
    $region13: #{tpu_custom_call.1} parent=1 // pred_fallthru
      _
    // Predicated region
    $region14: #{tpu_custom_call.1} parent=1 // pred_check
      _
    $region15: #{tpu_custom_call.1} parent=1 // pred_check_branch
      %17 = sbr.rel (0) target = $region17
    $region16: #{tpu_custom_call.1} parent=1 // pred_region
      _
    $region17: #{tpu_custom_call.1} parent=1 // pred_fallthru
      _
    %v18 = vld [vmem:[%s0] sm:$0xff]
    %v19 = vld [vmem:[%s3] sm:$0xff]
    %vm20 = vcmask 130048
    %v21 = vsel %vm20, %v18, 0.0
    %22 = vadd.xlane.f32.xlu0 %v21
    %v23 = vpop.xlane.xlu0 %22
    %v24 = vrcp.pop 16.0
    %v25 = vmul.f32 %v23, %v24
    %v26 = vsub.f32 %v18, %v25
    %v27 = vmul.f32 %v26, %v26
    %v28 = vsel %vm20, %v27, 0.0
    %29 = vadd.xlane.f32.xlu0 %v28
    %v30 = vpop.xlane.xlu0 %29
    %v31 = vmul.f32 %v30, %v24
    %v32 = vadd.f32 %v31, 1e-05
    %v33 = vrsqrt.pop %v32
    %v34 = vmul.f32 %v32, %v33
    %v35 = vmul.f32 %v26, %v33
    %37 = vset.pattern.permute.xlu0 0
    %38 = vperm.xlu0 %37, %v19
    %v39 = vpop.permute.xlu0 %38
    %v41 = vmul.f32 %v35, %v39
    %42 = vset.pattern.permute.xlu0 1
    %43 = vperm.xlu0 %42, %v19
    %v44 = vpop.permute.xlu0 %43
    %v46 = vadd.f32 %v41, %v44
    %v47 = vld [vmem:[%s1] sm:$0xff]
    %v48 = vld [vmem:[%s1 + $0x8] sm:$0xff]
    %v49 = vmul.f32 %v19, %v34
    %51 = vrot.lane.b32.xlu0 %v49, 127
    %v52 = vpop.permute.xlu0 %51
    %v54 = vmul.f32 %v19, %v52
    %v55 = vsub.f32 %v25, %v54
    %v56 = vld [vmem:[%s2] sm:$0x1]
    %v58 = vlaneseq
    %v59 = vshrl.u32 %v58, 7
    %v60 = vsub.s32 0, %v59
    %v61 = vrot.slane %v56, %v60
    %v64 = vsel %vm20, %v46, 0
    %66 = vmatprep.subr.mxu0 0.0
    %67 = vmatpush1.msra.mxu0 %v47
    %68 = vmatprep.subr.mxu0 0.0
    %69 = vmatpush1.msra.mxu0 %v48
    %70 = vmatprep.subr.mxu0 0.0
    %71 = vmatpush1.msra.mxu0 0.0
    %72 = vmatprep.subr.mxu0 0.0
    %73 = vmatpush1.msra.mxu0 0.0
    %74 = vmatprep.subr.mxu0 0.0
    %75 = vmatpush1.msra.mxu0 0.0
    %76 = vmatprep.subr.mxu0 0.0
    %77 = vmatpush1.msra.mxu0 0.0
    %78 = vmatprep.subr.mxu0 0.0
    %79 = vmatpush1.msra.mxu0 0.0
    %80 = vmatprep.subr.mxu0 0.0
    %81 = vmatpush1.msra.mxu0 0.0
    %82 = vmatprep.subr.mxu0 0.0
    %83 = vmatpush1.msra.mxu0 0.0
    %84 = vmatprep.subr.mxu0 0.0
    %85 = vmatpush1.msra.mxu0 0.0
    %86 = vmatprep.subr.mxu0 0.0
    %87 = vmatpush1.msra.mxu0 0.0
    %88 = vmatprep.subr.mxu0 0.0
    %89 = vmatpush1.msra.mxu0 0.0
    %90 = vmatprep.subr.mxu0 0.0
    %91 = vmatpush1.msra.mxu0 0.0
    %92 = vmatprep.subr.mxu0 0.0
    %93 = vmatpush1.msra.mxu0 0.0
    %94 = vmatprep.subr.mxu0 0.0
    %95 = vmatpush1.msra.mxu0 0.0
    %96 = vmatprep.subr.mxu0 0.0
    %97 = vmatpush1.msra.mxu0 0.0
    %98 = vmatprep.subr.mxu0 0.0
    %99 = vmatpush1.msra.mxu0 0.0
    %100 = vmatprep.subr.mxu0 0.0
    %101 = vmatpush1.msra.mxu0 0.0
    %102 = vmatprep.subr.mxu0 0.0
    %103 = vmatpush1.msra.mxu0 0.0
    %104 = vmatprep.subr.mxu0 0.0
    %105 = vmatpush1.msra.mxu0 0.0
    %106 = vmatprep.subr.mxu0 0.0
    %107 = vmatpush1.msra.mxu0 0.0
    %108 = vmatprep.subr.mxu0 0.0
    %109 = vmatpush1.msra.mxu0 0.0
    %110 = vmatprep.subr.mxu0 0.0
    %111 = vmatpush1.msra.mxu0 0.0
    %112 = vmatprep.subr.mxu0 0.0
    %113 = vmatpush1.msra.mxu0 0.0
    %114 = vmatprep.subr.mxu0 0.0
    %115 = vmatpush1.msra.mxu0 0.0
    %116 = vmatprep.subr.mxu0 0.0
    %117 = vmatpush1.msra.mxu0 0.0
    %118 = vmatprep.subr.mxu0 0.0
    %119 = vmatpush1.msra.mxu0 0.0
    %120 = vmatprep.subr.mxu0 0.0
    %121 = vmatpush1.msra.mxu0 0.0
    %122 = vmatprep.subr.mxu0 0.0
    %123 = vmatpush1.msra.mxu0 0.0
    %124 = vmatprep.subr.mxu0 0.0
    %125 = vmatpush1.msra.mxu0 0.0
    %126 = vmatprep.subr.mxu0 0.0
    %127 = vmatpush1.msra.mxu0 0.0
    %128 = vmatprep.subr.mxu0 0.0
    %129 = vmatpush1.msra.mxu0 0.0
    %130 = vmatprep.mubr.f32.mxu0 0.0
    %131 = vmatmul.mubr.f32.gmra.mrb[0].mxu0 %v64
    %v132 = vpop.f32.mrb[0].mxu0
    %v133 = vadd.f32 %v61, %v132
    %v134 = vpop.f32.mrb[0].mxu0
    %135 = vdwg.mxu0
    %136 = vset.pattern.permute.xlu0 2
    %137 = vperm.xlu0 %136, %v49
    %v138 = vpop.permute.xlu0 %137
    %v140 = vmul.f32 %v133, %v138
    %142 = vset.pattern.permute.xlu0 1
    %143 = vperm.xlu0 %142, %v55
    %v144 = vpop.permute.xlu0 %143
    %v146 = vadd.f32 %v140, %v144
    %vm147 = vcmask 64512
    %148 = vst.msk [vmem:[#allocation2] sm:$0xff] %vm147, %v146
    // Predicated region
    $region18: #{tpu_custom_call.1} parent=1 // pred_check
      _
    $region19: #{tpu_custom_call.1} parent=1 // pred_check_branch
      %150 = sbr.rel (0) target = $region21
    $region20: #{tpu_custom_call.1} parent=1 // pred_region
      %s152 = ssub.s32 128, 128
      %153 = vsyncadd [#allocation3], %s152
      %s155 = sshll.u32 [#allocation2], 4
      %s156 = int_to_ptr.vmem [resolvable:$true] %s155
      %158 = dma.vmem_to_hbm [thread:$0]  %s156, 128, %s4, [#allocation3]
    $region21: #{tpu_custom_call.1} parent=1 // pred_fallthru
      _
    // Predicated region
    $region22: #{tpu_custom_call.1} parent=1 // pred_check
      _
    $region23: #{tpu_custom_call.1} parent=1 // pred_check_branch
      %160 = sbr.rel (0) target = $region25
    $region24: #{tpu_custom_call.1} parent=1 // pred_region
      %161 = dma.done [#allocation3], 128
    $region25: #{tpu_custom_call.1} parent=1 // pred_fallthru
      _
    %162 = vsyncpa [#allocation3], 1

</llo_original>
